<compile_context>
chip_gen: v7x
topology: tpu7x:2x2x1
jax: 0.10.0
libtpu: 0.0.40
codegen_flags: <defaults>
</compile_context>

<pallas_src>
import functools

import jax
import jax.numpy as jnp
from jax import lax
from jax.experimental import pallas as pl
from jax.experimental.pallas import tpu as pltpu


def _qa_ce_kernel(start_ref, end_ref, ls_ref, le_ref, ansl_ref, la_ref,
                  start_out_ref, end_out_ref, ans_out_ref,
                  *, batch, tile_b, num_answers):
    g = pl.program_id(0)
    TB = tile_b
    A = num_answers

    row0 = g * TB                                                  # first batch row of this tile
    row_idx = row0 + lax.broadcasted_iota(jnp.int32, (TB, 1), 0)   # (TB, 1)
    row_ok = row_idx < batch                                       # masks the padded last tile

    # ------------------------- start loss partials -------------------------
    s = start_ref[...].astype(jnp.float32)                         # (TB, S)
    S = s.shape[-1]
    m = jnp.max(s, axis=-1, keepdims=True)                         # (TB, 1)
    lse = jnp.log(jnp.sum(jnp.exp(s - m), axis=-1, keepdims=True)) + m   # (TB, 1)
    # ^ hoisted: the start LSE is identical for every answer span -> one exp pass.

    ls = ls_ref[...]                                               # (TB, A) int32
    col = lax.broadcasted_iota(jnp.int32, (TB, S), 1)
    lane_a = lax.broadcasted_iota(jnp.int32, (1, A), 1)
    picked = jnp.zeros((TB, A), jnp.float32)
    for a in range(A):           # static & small: per-answer label pick only
        pk_a = jnp.sum(jnp.where(col == ls[:, a:a + 1], s, 0.0),
                       axis=-1, keepdims=True)                     # (TB, 1)
        picked = picked + pk_a * (lane_a == a).astype(jnp.float32)

    valid_s = row_ok & (ls >= 0)                                   # (TB, A)
    contrib_s = jnp.where(valid_s, lse - picked, 0.0)              # (TB, A), NaN-safe
    start_out_ref[0:1, :] = jnp.sum(contrib_s, axis=0, keepdims=True)                    # num
    start_out_ref[1:2, :] = jnp.sum(valid_s.astype(jnp.float32), axis=0, keepdims=True)  # den

    # -------------------------- end loss partials --------------------------
    e = end_ref[...].astype(jnp.float32)                           # (TB*A, S): all answers, one pass
    me = jnp.max(e, axis=-1, keepdims=True)
    lse_e = jnp.log(jnp.sum(jnp.exp(e - me), axis=-1, keepdims=True)) + me   # (TB*A, 1)
    le = le_ref[...]                                               # (TB*A, 1) int32
    col_e = lax.broadcasted_iota(jnp.int32, (TB * A, S), 1)
    picked_e = jnp.sum(jnp.where(col_e == le, e, 0.0), axis=-1, keepdims=True)

    erow = lax.broadcasted_iota(jnp.int32, (TB * A, 1), 0)
    valid_e = ((row0 * A + erow) < batch * A) & (le >= 0)          # (TB*A, 1)
    contrib_e = jnp.where(valid_e, lse_e - picked_e, 0.0)          # (TB*A, 1)
    onehot = (erow % A == lane_a).astype(jnp.float32)              # (TB*A, A): answer id = row % A
    end_out_ref[0:1, :] = jnp.sum(contrib_e * onehot, axis=0, keepdims=True)
    end_out_ref[1:2, :] = jnp.sum(valid_e.astype(jnp.float32) * onehot,
                                  axis=0, keepdims=True)

    # --------------------- answerability loss partials ---------------------
    al = ansl_ref[...].astype(jnp.float32)                         # (TB, C)
    C = al.shape[-1]
    ma = jnp.max(al, axis=-1, keepdims=True)
    lse_a = jnp.log(jnp.sum(jnp.exp(al - ma), axis=-1, keepdims=True)) + ma
    la = la_ref[...]                                               # (TB, 1) int32
    col_a = lax.broadcasted_iota(jnp.int32, (TB, C), 1)
    picked_a = jnp.sum(jnp.where(col_a == la, al, 0.0), axis=-1, keepdims=True)
    valid_a = row_ok & (la >= 0)
    contrib_a = jnp.where(valid_a, lse_a - picked_a, 0.0)
    ans_out_ref[:, 0:1] = jnp.sum(contrib_a, axis=0, keepdims=True)
    ans_out_ref[:, 1:2] = jnp.sum(valid_a.astype(jnp.float32), axis=0, keepdims=True)


def _pick_tile_rows(batch, num_answers, seq_len, itemsize):
    """Batch-tile size: native-dtype logit blocks (double-buffered) + the f32
    cast/exp intermediates must stay well inside the default scoped VMEM
    (16 MiB v5e, 32 MiB v6e/v7x; v7x physical is only 64 MiB)."""
    per_row = (num_answers + 1) * seq_len * (2 * itemsize + 8) + 4096
    budget = 12 * 1024 * 1024
    tb = budget // per_row
    tb = int(max(8, min(512, (tb // 8) * 8)))
    return batch if batch <= tb else tb


def qa_start_end_cross_entropy(qa_logits_start, qa_logits_end,
                               labels_start, labels_end,
                               answerability_logits, labels_answerability,
                               *, tile_rows=None):
    B, S = qa_logits_start.shape
    _, A, _ = qa_logits_end.shape
    C = answerability_logits.shape[-1]

    # Layout-free leading-dim merge: end path becomes one dense (B*A, S) pass.
    end_flat = qa_logits_end.reshape(B * A, S)
    le_flat = labels_end.astype(jnp.int32).reshape(B * A, 1)
    ls = labels_start.astype(jnp.int32)
    la = labels_answerability.astype(jnp.int32).reshape(B, 1)

    itemsize = jnp.dtype(qa_logits_start.dtype).itemsize
    TB = tile_rows if tile_rows is not None else _pick_tile_rows(B, A, S, itemsize)
    G = (B + TB - 1) // TB

    kernel = functools.partial(_qa_ce_kernel, batch=B, tile_b=TB, num_answers=A)

    in_bytes = ((qa_logits_start.size + qa_logits_end.size
                 + answerability_logits.size) * itemsize
                + (ls.size + le_flat.size + la.size) * 4)
    cost = pl.CostEstimate(flops=8 * B * (A + 1) * S,
                           transcendentals=B * (A + 1) * S + B * C,
                           bytes_accessed=in_bytes)

    p_start, p_end, p_ans = pl.pallas_call(
        kernel,
        grid=(G,),
        in_specs=[
            pl.BlockSpec((TB, S), lambda g: (g, 0)),          # start logits (native dtype)
            pl.BlockSpec((TB * A, S), lambda g: (g, 0)),      # end logits, flattened
            pl.BlockSpec((TB, A), lambda g: (g, 0)),          # labels_start
            pl.BlockSpec((TB * A, 1), lambda g: (g, 0)),      # labels_end, flattened
            pl.BlockSpec((TB, C), lambda g: (g, 0)),          # answerability logits
            pl.BlockSpec((TB, 1), lambda g: (g, 0)),          # labels_answerability
        ],
        out_specs=(
            pl.BlockSpec((None, 2, A), lambda g: (g, 0, 0)),  # start [num; den] per answer
            pl.BlockSpec((None, 2, A), lambda g: (g, 0, 0)),  # end   [num; den] per answer
            pl.BlockSpec((None, 1, 2), lambda g: (g, 0, 0)),  # ans   [num, den]
        ),
        out_shape=(
            jax.ShapeDtypeStruct((G, 2, A), jnp.float32),
            jax.ShapeDtypeStruct((G, 2, A), jnp.float32),
            jax.ShapeDtypeStruct((G, 1, 2), jnp.float32),
        ),
        compiler_params=pltpu.CompilerParams(
            dimension_semantics=("parallel",)),
        cost_estimate=cost,
    )(qa_logits_start, end_flat, ls, le_flat, answerability_logits, la)

    # Tiny final reduction/divides in JAX: global denominators per answer
    # (preserves torch's mean-of-means + ignore_index semantics under tiling).
    s_tot = jnp.sum(p_start, axis=0)          # (2, A)
    e_tot = jnp.sum(p_end, axis=0)            # (2, A)
    a_tot = jnp.sum(p_ans, axis=0)            # (1, 2)

    start_loss = jnp.mean(s_tot[0] / s_tot[1])
    end_loss = jnp.mean(e_tot[0] / e_tot[1])
    total_loss = (start_loss + end_loss) * 0.5
    answer_loss = a_tot[0, 0] / a_tot[0, 1]
    return total_loss, answer_loss


def _reference(qa_logits_start, qa_logits_end, labels_start, labels_end,
               answerability_logits, labels_answerability):
    """Pure-JAX reference mirroring nn.CrossEntropyLoss(ignore_index=-1)."""
    def ce(logits, labels):
        logp = jax.nn.log_softmax(logits.astype(jnp.float32), axis=-1)
        safe = jnp.where(labels < 0, 0, labels)
        nll = -jnp.take_along_axis(logp, safe[:, None], axis=-1)[:, 0]
        valid = (labels >= 0).astype(jnp.float32)
        return jnp.sum(nll * valid) / jnp.sum(valid)

    A = labels_start.shape[1]
    start = jnp.mean(jnp.stack([ce(qa_logits_start, labels_start[:, i])
                                for i in range(A)]))
    end = jnp.mean(jnp.stack([ce(qa_logits_end[:, i], labels_end[:, i])
                              for i in range(A)]))
    total = (start + end) / 2.0
    ans = ce(answerability_logits, labels_answerability)
    return total, ans


def _run_case(key, B, A, S, C, tile_rows=None):
    k1, k2, k3, k4, k5, k6 = jax.random.split(key, 6)
    qa_logits_start = jax.random.normal(k1, (B, S), jnp.float32)
    qa_logits_end = jax.random.normal(k2, (B, A, S), jnp.float32)
    labels_start = jax.random.randint(k3, (B, A), 0, S, jnp.int32)
    labels_end = jax.random.randint(k4, (B, A), 0, S, jnp.int32)
    # exercise ignore_index = -1 masking
    labels_start = labels_start.at[0, 1].set(-1)
    labels_end = labels_end.at[B - 1, 2].set(-1)
    answerability_logits = jax.random.normal(k5, (B, C), jnp.float32)
    labels_answerability = jax.random.randint(k6, (B,), 0, C, jnp.int32)

    total_loss, answer_loss = qa_start_end_cross_entropy(
        qa_logits_start, qa_logits_end, labels_start, labels_end,
        answerability_logits, labels_answerability, tile_rows=tile_rows)
    jax.block_until_ready((total_loss, answer_loss))

    ref_total, ref_ans = _reference(
        qa_logits_start, qa_logits_end, labels_start, labels_end,
        answerability_logits, labels_answerability)

    assert jnp.allclose(total_loss, ref_total, rtol=1e-5, atol=1e-5), (total_loss, ref_total)
    assert jnp.allclose(answer_loss, ref_ans, rtol=1e-5, atol=1e-5), (answer_loss, ref_ans)


if __name__ == "__main__":
    key = jax.random.PRNGKey(0)
    k_a, k_b = jax.random.split(key)

    # small shapes consistent with the module (single-tile path)
    _run_case(k_a, B=2, A=4, S=128, C=2)

    # multi-tile path: grid over batch with a padded last tile (B not % TB)
    _run_case(k_b, B=10, A=4, S=256, C=2, tile_rows=8)

    print("KERNEL_OK")
</pallas_src>

<mosaic_0001>
module attributes {stable_mosaic.version = 11 : i64} {
  func.func @_qa_ce_kernel(%arg0: i32, %arg1: memref<2x128xf32, #tpu.memory_space<vmem>>, %arg2: memref<8x128xf32, #tpu.memory_space<vmem>>, %arg3: memref<2x4xi32, #tpu.memory_space<vmem>>, %arg4: memref<8x1xi32, #tpu.memory_space<vmem>>, %arg5: memref<2x2xf32, #tpu.memory_space<vmem>>, %arg6: memref<2x1xi32, #tpu.memory_space<vmem>>, %arg7: memref<1x2x4xf32, #tpu.memory_space<vmem>>, %arg8: memref<1x2x4xf32, #tpu.memory_space<vmem>>, %arg9: memref<1x1x2xf32, #tpu.memory_space<vmem>>) attributes {dimension_semantics = [#tpu.dimension_semantics<parallel>], iteration_bounds = array<i64: 1>, scalar_prefetch = 0 : i64, scratch_operands = 0 : i64, tpu.core_type = #tpu.core_type<tc>, window_params = [{transform_indices = @transform_0, window_bounds = array<i64: 2, 128>}, {transform_indices = @transform_1, window_bounds = array<i64: 8, 128>}, {transform_indices = @transform_2, window_bounds = array<i64: 2, 4>}, {transform_indices = @transform_3, window_bounds = array<i64: 8, 1>}, {transform_indices = @transform_4, window_bounds = array<i64: 2, 2>}, {transform_indices = @transform_5, window_bounds = array<i64: 2, 1>}, {transform_indices = @transform_6, window_bounds = array<i64: 1, 2, 4>}, {transform_indices = @transform_7, window_bounds = array<i64: 1, 2, 4>}, {transform_indices = @transform_8, window_bounds = array<i64: 1, 1, 2>}]} {
    %c2_i32 = arith.constant 2 : i32
    %0 = arith.muli %arg0, %c2_i32 : i32
    %1 = tpu.iota {dimensions = array<i32: 0>} : vector<2x1xi32>
    %2 = vector.broadcast %0 : i32 to vector<2x1xi32>
    %3 = arith.addi %2, %1 : vector<2x1xi32>
    %c2_i32_0 = arith.constant 2 : i32
    %4 = vector.broadcast %c2_i32_0 : i32 to vector<2x1xi32>
    %5 = arith.cmpi slt, %3, %4 : vector<2x1xi32>
    %c0 = arith.constant 0 : index
    %c0_1 = arith.constant 0 : index
    %6 = vector.load %arg1[%c0, %c0_1] : memref<2x128xf32, #tpu.memory_space<vmem>>, vector<2x128xf32>
    %cst = arith.constant dense<0xFF800000> : vector<2xf32>
    %7 = vector.multi_reduction <maximumf>, %6, %cst [1] : vector<2x128xf32> to vector<2xf32>
    %8 = vector.shape_cast %7 : vector<2xf32> to vector<2x1xf32>
    %9 = vector.broadcast %8 : vector<2x1xf32> to vector<2x128xf32>
    %10 = arith.subf %6, %9 : vector<2x128xf32>
    %11 = math.exp %10 : vector<2x128xf32>
    %cst_2 = arith.constant dense<0.000000e+00> : vector<2xf32>
    %12 = vector.multi_reduction <add>, %11, %cst_2 [1] : vector<2x128xf32> to vector<2xf32>
    %13 = vector.shape_cast %12 : vector<2xf32> to vector<2x1xf32>
    %14 = math.log %13 : vector<2x1xf32>
    %15 = arith.addf %14, %8 : vector<2x1xf32>
    %c0_3 = arith.constant 0 : index
    %c0_4 = arith.constant 0 : index
    %16 = vector.load %arg3[%c0_3, %c0_4] : memref<2x4xi32, #tpu.memory_space<vmem>>, vector<2x4xi32>
    %17 = tpu.iota {dimensions = array<i32: 1>} : vector<2x128xi32>
    %18 = tpu.iota {dimensions = array<i32: 1>} : vector<1x4xi32>
    %cst_5 = arith.constant 0.000000e+00 : f32
    %19 = vector.broadcast %cst_5 : f32 to vector<2x4xf32>
    %20 = vector.extract_strided_slice %16 {offsets = [0, 0], sizes = [2, 1], strides = [1, 1]} : vector<2x4xi32> to vector<2x1xi32>
    %21 = vector.broadcast %20 : vector<2x1xi32> to vector<2x128xi32>
    %22 = arith.cmpi eq, %17, %21 : vector<2x128xi32>
    %cst_6 = arith.constant 0.000000e+00 : f32
    %23 = vector.broadcast %cst_6 : f32 to vector<2x128xf32>
    %24 = arith.select %22, %6, %23 : vector<2x128xi1>, vector<2x128xf32>
    %cst_7 = arith.constant dense<0.000000e+00> : vector<2xf32>
    %25 = vector.multi_reduction <add>, %24, %cst_7 [1] : vector<2x128xf32> to vector<2xf32>
    %26 = vector.shape_cast %25 : vector<2xf32> to vector<2x1xf32>
    %c0_i32 = arith.constant 0 : i32
    %27 = vector.broadcast %c0_i32 : i32 to vector<1x4xi32>
    %28 = arith.cmpi eq, %18, %27 : vector<1x4xi32>
    %29 = arith.extui %28 : vector<1x4xi1> to vector<1x4xi32>
    %30 = arith.sitofp %29 : vector<1x4xi32> to vector<1x4xf32>
    %31 = vector.broadcast %26 : vector<2x1xf32> to vector<2x4xf32>
    %32 = vector.broadcast %30 : vector<1x4xf32> to vector<2x4xf32>
    %33 = arith.mulf %31, %32 : vector<2x4xf32>
    %34 = arith.addf %19, %33 : vector<2x4xf32>
    %35 = vector.extract_strided_slice %16 {offsets = [0, 1], sizes = [2, 1], strides = [1, 1]} : vector<2x4xi32> to vector<2x1xi32>
    %36 = vector.broadcast %35 : vector<2x1xi32> to vector<2x128xi32>
    %37 = arith.cmpi eq, %17, %36 : vector<2x128xi32>
    %cst_8 = arith.constant 0.000000e+00 : f32
    %38 = vector.broadcast %cst_8 : f32 to vector<2x128xf32>
    %39 = arith.select %37, %6, %38 : vector<2x128xi1>, vector<2x128xf32>
    %cst_9 = arith.constant dense<0.000000e+00> : vector<2xf32>
    %40 = vector.multi_reduction <add>, %39, %cst_9 [1] : vector<2x128xf32> to vector<2xf32>
    %41 = vector.shape_cast %40 : vector<2xf32> to vector<2x1xf32>
    %c1_i32 = arith.constant 1 : i32
    %42 = vector.broadcast %c1_i32 : i32 to vector<1x4xi32>
    %43 = arith.cmpi eq, %18, %42 : vector<1x4xi32>
    %44 = arith.extui %43 : vector<1x4xi1> to vector<1x4xi32>
    %45 = arith.sitofp %44 : vector<1x4xi32> to vector<1x4xf32>
    %46 = vector.broadcast %41 : vector<2x1xf32> to vector<2x4xf32>
    %47 = vector.broadcast %45 : vector<1x4xf32> to vector<2x4xf32>
    %48 = arith.mulf %46, %47 : vector<2x4xf32>
    %49 = arith.addf %34, %48 : vector<2x4xf32>
    %50 = vector.extract_strided_slice %16 {offsets = [0, 2], sizes = [2, 1], strides = [1, 1]} : vector<2x4xi32> to vector<2x1xi32>
    %51 = vector.broadcast %50 : vector<2x1xi32> to vector<2x128xi32>
    %52 = arith.cmpi eq, %17, %51 : vector<2x128xi32>
    %cst_10 = arith.constant 0.000000e+00 : f32
    %53 = vector.broadcast %cst_10 : f32 to vector<2x128xf32>
    %54 = arith.select %52, %6, %53 : vector<2x128xi1>, vector<2x128xf32>
    %cst_11 = arith.constant dense<0.000000e+00> : vector<2xf32>
    %55 = vector.multi_reduction <add>, %54, %cst_11 [1] : vector<2x128xf32> to vector<2xf32>
    %56 = vector.shape_cast %55 : vector<2xf32> to vector<2x1xf32>
    %c2_i32_12 = arith.constant 2 : i32
    %57 = vector.broadcast %c2_i32_12 : i32 to vector<1x4xi32>
    %58 = arith.cmpi eq, %18, %57 : vector<1x4xi32>
    %59 = arith.extui %58 : vector<1x4xi1> to vector<1x4xi32>
    %60 = arith.sitofp %59 : vector<1x4xi32> to vector<1x4xf32>
    %61 = vector.broadcast %56 : vector<2x1xf32> to vector<2x4xf32>
    %62 = vector.broadcast %60 : vector<1x4xf32> to vector<2x4xf32>
    %63 = arith.mulf %61, %62 : vector<2x4xf32>
    %64 = arith.addf %49, %63 : vector<2x4xf32>
    %65 = vector.extract_strided_slice %16 {offsets = [0, 3], sizes = [2, 1], strides = [1, 1]} : vector<2x4xi32> to vector<2x1xi32>
    %66 = vector.broadcast %65 : vector<2x1xi32> to vector<2x128xi32>
    %67 = arith.cmpi eq, %17, %66 : vector<2x128xi32>
    %cst_13 = arith.constant 0.000000e+00 : f32
    %68 = vector.broadcast %cst_13 : f32 to vector<2x128xf32>
    %69 = arith.select %67, %6, %68 : vector<2x128xi1>, vector<2x128xf32>
    %cst_14 = arith.constant dense<0.000000e+00> : vector<2xf32>
    %70 = vector.multi_reduction <add>, %69, %cst_14 [1] : vector<2x128xf32> to vector<2xf32>
    %71 = vector.shape_cast %70 : vector<2xf32> to vector<2x1xf32>
    %c3_i32 = arith.constant 3 : i32
    %72 = vector.broadcast %c3_i32 : i32 to vector<1x4xi32>
    %73 = arith.cmpi eq, %18, %72 : vector<1x4xi32>
    %74 = arith.extui %73 : vector<1x4xi1> to vector<1x4xi32>
    %75 = arith.sitofp %74 : vector<1x4xi32> to vector<1x4xf32>
    %76 = vector.broadcast %71 : vector<2x1xf32> to vector<2x4xf32>
    %77 = vector.broadcast %75 : vector<1x4xf32> to vector<2x4xf32>
    %78 = arith.mulf %76, %77 : vector<2x4xf32>
    %79 = arith.addf %64, %78 : vector<2x4xf32>
    %c0_i32_15 = arith.constant 0 : i32
    %80 = vector.broadcast %c0_i32_15 : i32 to vector<2x4xi32>
    %81 = arith.cmpi sge, %16, %80 : vector<2x4xi32>
    %82 = vector.broadcast %5 : vector<2x1xi1> to vector<2x4xi1>
    %83 = arith.andi %82, %81 : vector<2x4xi1>
    %84 = vector.broadcast %15 : vector<2x1xf32> to vector<2x4xf32>
    %85 = arith.subf %84, %79 : vector<2x4xf32>
    %cst_16 = arith.constant 0.000000e+00 : f32
    %86 = vector.broadcast %cst_16 : f32 to vector<2x4xf32>
    %87 = arith.select %83, %85, %86 : vector<2x4xi1>, vector<2x4xf32>
    %cst_17 = arith.constant dense<0.000000e+00> : vector<4xf32>
    %88 = vector.multi_reduction <add>, %87, %cst_17 [0] : vector<2x4xf32> to vector<4xf32>
    %89 = vector.shape_cast %88 : vector<4xf32> to vector<1x4xf32>
    %c0_18 = arith.constant 0 : index
    %c0_19 = arith.constant 0 : index
    %c0_20 = arith.constant 0 : index
    %90 = vector.load %arg7[%c0_18, %c0_19, %c0_20] : memref<1x2x4xf32, #tpu.memory_space<vmem>>, vector<1x1x4xf32>
    %91 = vector.shape_cast %90 : vector<1x1x4xf32> to vector<1x4xf32>
    %92 = vector.shape_cast %89 : vector<1x4xf32> to vector<1x1x4xf32>
    tpu.vector_store %arg7[%c0_18, %c0_19, %c0_20], %92 {strides = array<i32>} : memref<1x2x4xf32, #tpu.memory_space<vmem>>, vector<1x1x4xf32>,
    %93 = arith.extui %83 : vector<2x4xi1> to vector<2x4xi32>
    %94 = arith.sitofp %93 : vector<2x4xi32> to vector<2x4xf32>
    %cst_21 = arith.constant dense<0.000000e+00> : vector<4xf32>
    %95 = vector.multi_reduction <add>, %94, %cst_21 [0] : vector<2x4xf32> to vector<4xf32>
    %96 = vector.shape_cast %95 : vector<4xf32> to vector<1x4xf32>
    %c0_22 = arith.constant 0 : index
    %c1 = arith.constant 1 : index
    %c0_23 = arith.constant 0 : index
    %97 = vector.load %arg7[%c0_22, %c1, %c0_23] : memref<1x2x4xf32, #tpu.memory_space<vmem>>, vector<1x1x4xf32>
    %98 = vector.shape_cast %97 : vector<1x1x4xf32> to vector<1x4xf32>
    %99 = vector.shape_cast %96 : vector<1x4xf32> to vector<1x1x4xf32>
    tpu.vector_store %arg7[%c0_22, %c1, %c0_23], %99 {strides = array<i32>} : memref<1x2x4xf32, #tpu.memory_space<vmem>>, vector<1x1x4xf32>,
    %c0_24 = arith.constant 0 : index
    %c0_25 = arith.constant 0 : index
    %100 = vector.load %arg2[%c0_24, %c0_25] : memref<8x128xf32, #tpu.memory_space<vmem>>, vector<8x128xf32>
    %cst_26 = arith.constant dense<0xFF800000> : vector<8xf32>
    %101 = vector.multi_reduction <maximumf>, %100, %cst_26 [1] : vector<8x128xf32> to vector<8xf32>
    %102 = vector.shape_cast %101 : vector<8xf32> to vector<8x1xf32>
    %103 = vector.broadcast %102 : vector<8x1xf32> to vector<8x128xf32>
    %104 = arith.subf %100, %103 : vector<8x128xf32>
    %105 = math.exp %104 : vector<8x128xf32>
    %cst_27 = arith.constant dense<0.000000e+00> : vector<8xf32>
    %106 = vector.multi_reduction <add>, %105, %cst_27 [1] : vector<8x128xf32> to vector<8xf32>
    %107 = vector.shape_cast %106 : vector<8xf32> to vector<8x1xf32>
    %108 = math.log %107 : vector<8x1xf32>
    %109 = arith.addf %108, %102 : vector<8x1xf32>
    %c0_28 = arith.constant 0 : index
    %c0_29 = arith.constant 0 : index
    %110 = vector.load %arg4[%c0_28, %c0_29] : memref<8x1xi32, #tpu.memory_space<vmem>>, vector<8x1xi32>
    %111 = tpu.iota {dimensions = array<i32: 1>} : vector<8x128xi32>
    %112 = vector.broadcast %110 : vector<8x1xi32> to vector<8x128xi32>
    %113 = arith.cmpi eq, %111, %112 : vector<8x128xi32>
    %cst_30 = arith.constant 0.000000e+00 : f32
    %114 = vector.broadcast %cst_30 : f32 to vector<8x128xf32>
    %115 = arith.select %113, %100, %114 : vector<8x128xi1>, vector<8x128xf32>
    %cst_31 = arith.constant dense<0.000000e+00> : vector<8xf32>
    %116 = vector.multi_reduction <add>, %115, %cst_31 [1] : vector<8x128xf32> to vector<8xf32>
    %117 = vector.shape_cast %116 : vector<8xf32> to vector<8x1xf32>
    %118 = tpu.iota {dimensions = array<i32: 0>} : vector<8x1xi32>
    %c4_i32 = arith.constant 4 : i32
    %119 = arith.muli %0, %c4_i32 : i32
    %120 = vector.broadcast %119 : i32 to vector<8x1xi32>
    %121 = arith.addi %120, %118 : vector<8x1xi32>
    %c8_i32 = arith.constant 8 : i32
    %122 = vector.broadcast %c8_i32 : i32 to vector<8x1xi32>
    %123 = arith.cmpi slt, %121, %122 : vector<8x1xi32>
    %c0_i32_32 = arith.constant 0 : i32
    %124 = vector.broadcast %c0_i32_32 : i32 to vector<8x1xi32>
    %125 = arith.cmpi sge, %110, %124 : vector<8x1xi32>
    %126 = arith.andi %123, %125 : vector<8x1xi1>
    %127 = arith.subf %109, %117 : vector<8x1xf32>
    %cst_33 = arith.constant 0.000000e+00 : f32
    %128 = vector.broadcast %cst_33 : f32 to vector<8x1xf32>
    %129 = arith.select %126, %127, %128 : vector<8x1xi1>, vector<8x1xf32>
    %c4_i32_34 = arith.constant 4 : i32
    %c0_i32_35 = arith.constant 0 : i32
    %130 = arith.cmpi eq, %c4_i32_34, %c0_i32_35 : i32
    %c1_i32_36 = arith.constant 1 : i32
    %131 = arith.select %130, %c1_i32_36, %c4_i32_34 : i32
    %132 = vector.broadcast %131 : i32 to vector<8x1xi32>
    %133 = arith.remsi %118, %132 : vector<8x1xi32>
    %c0_i32_37 = arith.constant 0 : i32
    %134 = vector.broadcast %c0_i32_37 : i32 to vector<8x1xi32>
    %135 = arith.cmpi ne, %133, %134 : vector<8x1xi32>
    %c0_i32_38 = arith.constant 0 : i32
    %136 = vector.broadcast %c0_i32_38 : i32 to vector<8x1xi32>
    %137 = arith.cmpi slt, %133, %136 : vector<8x1xi32>
    %c0_i32_39 = arith.constant 0 : i32
    %138 = arith.cmpi slt, %131, %c0_i32_39 : i32
    %139 = vector.broadcast %138 : i1 to vector<8x1xi1>
    %140 = vector.broadcast %139 : vector<8x1xi1> to vector<8x1xi1>
    %141 = arith.xori %137, %140 : vector<8x1xi1>
    %142 = arith.andi %141, %135 : vector<8x1xi1>
    %143 = vector.broadcast %131 : i32 to vector<8x1xi32>
    %144 = arith.addi %133, %143 : vector<8x1xi32>
    %145 = arith.select %142, %144, %133 : vector<8x1xi1>, vector<8x1xi32>
    %146 = vector.broadcast %145 : vector<8x1xi32> to vector<8x4xi32>
    %147 = vector.broadcast %18 : vector<1x4xi32> to vector<8x4xi32>
    %148 = arith.cmpi eq, %146, %147 : vector<8x4xi32>
    %149 = arith.extui %148 : vector<8x4xi1> to vector<8x4xi32>
    %150 = arith.sitofp %149 : vector<8x4xi32> to vector<8x4xf32>
    %151 = vector.broadcast %129 : vector<8x1xf32> to vector<8x4xf32>
    %152 = arith.mulf %151, %150 : vector<8x4xf32>
    %cst_40 = arith.constant dense<0.000000e+00> : vector<4xf32>
    %153 = vector.multi_reduction <add>, %152, %cst_40 [0] : vector<8x4xf32> to vector<4xf32>
    %154 = vector.shape_cast %153 : vector<4xf32> to vector<1x4xf32>
    %c0_41 = arith.constant 0 : index
    %c0_42 = arith.constant 0 : index
    %c0_43 = arith.constant 0 : index
    %155 = vector.load %arg8[%c0_41, %c0_42, %c0_43] : memref<1x2x4xf32, #tpu.memory_space<vmem>>, vector<1x1x4xf32>
    %156 = vector.shape_cast %155 : vector<1x1x4xf32> to vector<1x4xf32>
    %157 = vector.shape_cast %154 : vector<1x4xf32> to vector<1x1x4xf32>
    tpu.vector_store %arg8[%c0_41, %c0_42, %c0_43], %157 {strides = array<i32>} : memref<1x2x4xf32, #tpu.memory_space<vmem>>, vector<1x1x4xf32>,
    %158 = arith.extui %126 : vector<8x1xi1> to vector<8x1xi32>
    %159 = arith.sitofp %158 : vector<8x1xi32> to vector<8x1xf32>
    %160 = vector.broadcast %159 : vector<8x1xf32> to vector<8x4xf32>
    %161 = arith.mulf %160, %150 : vector<8x4xf32>
    %cst_44 = arith.constant dense<0.000000e+00> : vector<4xf32>
    %162 = vector.multi_reduction <add>, %161, %cst_44 [0] : vector<8x4xf32> to vector<4xf32>
    %163 = vector.shape_cast %162 : vector<4xf32> to vector<1x4xf32>
    %c0_45 = arith.constant 0 : index
    %c1_46 = arith.constant 1 : index
    %c0_47 = arith.constant 0 : index
    %164 = vector.load %arg8[%c0_45, %c1_46, %c0_47] : memref<1x2x4xf32, #tpu.memory_space<vmem>>, vector<1x1x4xf32>
    %165 = vector.shape_cast %164 : vector<1x1x4xf32> to vector<1x4xf32>
    %166 = vector.shape_cast %163 : vector<1x4xf32> to vector<1x1x4xf32>
    tpu.vector_store %arg8[%c0_45, %c1_46, %c0_47], %166 {strides = array<i32>} : memref<1x2x4xf32, #tpu.memory_space<vmem>>, vector<1x1x4xf32>,
    %c0_48 = arith.constant 0 : index
    %c0_49 = arith.constant 0 : index
    %167 = vector.load %arg5[%c0_48, %c0_49] : memref<2x2xf32, #tpu.memory_space<vmem>>, vector<2x2xf32>
    %cst_50 = arith.constant dense<0xFF800000> : vector<2xf32>
    %168 = vector.multi_reduction <maximumf>, %167, %cst_50 [1] : vector<2x2xf32> to vector<2xf32>
    %169 = vector.shape_cast %168 : vector<2xf32> to vector<2x1xf32>
    %170 = vector.broadcast %169 : vector<2x1xf32> to vector<2x2xf32>
    %171 = arith.subf %167, %170 : vector<2x2xf32>
    %172 = math.exp %171 : vector<2x2xf32>
    %cst_51 = arith.constant dense<0.000000e+00> : vector<2xf32>
    %173 = vector.multi_reduction <add>, %172, %cst_51 [1] : vector<2x2xf32> to vector<2xf32>
    %174 = vector.shape_cast %173 : vector<2xf32> to vector<2x1xf32>
    %175 = math.log %174 : vector<2x1xf32>
    %176 = arith.addf %175, %169 : vector<2x1xf32>
    %c0_52 = arith.constant 0 : index
    %c0_53 = arith.constant 0 : index
    %177 = vector.load %arg6[%c0_52, %c0_53] : memref<2x1xi32, #tpu.memory_space<vmem>>, vector<2x1xi32>
    %178 = tpu.iota {dimensions = array<i32: 1>} : vector<2x2xi32>
    %179 = vector.broadcast %177 : vector<2x1xi32> to vector<2x2xi32>
    %180 = arith.cmpi eq, %178, %179 : vector<2x2xi32>
    %cst_54 = arith.constant 0.000000e+00 : f32
    %181 = vector.broadcast %cst_54 : f32 to vector<2x2xf32>
    %182 = arith.select %180, %167, %181 : vector<2x2xi1>, vector<2x2xf32>
    %cst_55 = arith.constant dense<0.000000e+00> : vector<2xf32>
    %183 = vector.multi_reduction <add>, %182, %cst_55 [1] : vector<2x2xf32> to vector<2xf32>
    %184 = vector.shape_cast %183 : vector<2xf32> to vector<2x1xf32>
    %c0_i32_56 = arith.constant 0 : i32
    %185 = vector.broadcast %c0_i32_56 : i32 to vector<2x1xi32>
    %186 = arith.cmpi sge, %177, %185 : vector<2x1xi32>
    %187 = arith.andi %5, %186 : vector<2x1xi1>
    %188 = arith.subf %176, %184 : vector<2x1xf32>
    %cst_57 = arith.constant 0.000000e+00 : f32
    %189 = vector.broadcast %cst_57 : f32 to vector<2x1xf32>
    %190 = arith.select %187, %188, %189 : vector<2x1xi1>, vector<2x1xf32>
    %cst_58 = arith.constant dense<0.000000e+00> : vector<1xf32>
    %191 = vector.multi_reduction <add>, %190, %cst_58 [0] : vector<2x1xf32> to vector<1xf32>
    %192 = vector.shape_cast %191 : vector<1xf32> to vector<1x1xf32>
    %c0_59 = arith.constant 0 : index
    %c0_60 = arith.constant 0 : index
    %c0_61 = arith.constant 0 : index
    %193 = vector.load %arg9[%c0_59, %c0_60, %c0_61] : memref<1x1x2xf32, #tpu.memory_space<vmem>>, vector<1x1x1xf32>
    %194 = vector.shape_cast %193 : vector<1x1x1xf32> to vector<1x1xf32>
    %195 = vector.shape_cast %192 : vector<1x1xf32> to vector<1x1x1xf32>
    tpu.vector_store %arg9[%c0_59, %c0_60, %c0_61], %195 {strides = array<i32>} : memref<1x1x2xf32, #tpu.memory_space<vmem>>, vector<1x1x1xf32>,
    %196 = arith.extui %187 : vector<2x1xi1> to vector<2x1xi32>
    %197 = arith.sitofp %196 : vector<2x1xi32> to vector<2x1xf32>
    %cst_62 = arith.constant dense<0.000000e+00> : vector<1xf32>
    %198 = vector.multi_reduction <add>, %197, %cst_62 [0] : vector<2x1xf32> to vector<1xf32>
    %199 = vector.shape_cast %198 : vector<1xf32> to vector<1x1xf32>
    %c0_63 = arith.constant 0 : index
    %c0_64 = arith.constant 0 : index
    %c1_65 = arith.constant 1 : index
    %200 = vector.load %arg9[%c0_63, %c0_64, %c1_65] : memref<1x1x2xf32, #tpu.memory_space<vmem>>, vector<1x1x1xf32>
    %201 = vector.shape_cast %200 : vector<1x1x1xf32> to vector<1x1xf32>
    %202 = vector.shape_cast %199 : vector<1x1xf32> to vector<1x1x1xf32>
    tpu.vector_store %arg9[%c0_63, %c0_64, %c1_65], %202 {strides = array<i32>} : memref<1x1x2xf32, #tpu.memory_space<vmem>>, vector<1x1x1xf32>,
    return
  }
  func.func @transform_0(%arg0: i32) -> (i32, i32) {
    %c0_i32 = arith.constant 0 : i32
    %c0_i32_0 = arith.constant 0 : i32
    return %arg0, %c0_i32 : i32, i32
  }
  func.func @transform_1(%arg0: i32) -> (i32, i32) {
    %c0_i32 = arith.constant 0 : i32
    %c0_i32_0 = arith.constant 0 : i32
    return %arg0, %c0_i32 : i32, i32
  }
  func.func @transform_2(%arg0: i32) -> (i32, i32) {
    %c0_i32 = arith.constant 0 : i32
    %c0_i32_0 = arith.constant 0 : i32
    return %arg0, %c0_i32 : i32, i32
  }
  func.func @transform_3(%arg0: i32) -> (i32, i32) {
    %c0_i32 = arith.constant 0 : i32
    %c0_i32_0 = arith.constant 0 : i32
    return %arg0, %c0_i32 : i32, i32
  }
  func.func @transform_4(%arg0: i32) -> (i32, i32) {
    %c0_i32 = arith.constant 0 : i32
    %c0_i32_0 = arith.constant 0 : i32
    return %arg0, %c0_i32 : i32, i32
  }
  func.func @transform_5(%arg0: i32) -> (i32, i32) {
    %c0_i32 = arith.constant 0 : i32
    %c0_i32_0 = arith.constant 0 : i32
    return %arg0, %c0_i32 : i32, i32
  }
  func.func @transform_6(%arg0: i32) -> (i32, i32, i32) {
    %c0_i32 = arith.constant 0 : i32
    %c0_i32_0 = arith.constant 0 : i32
    %c0_i32_1 = arith.constant 0 : i32
    return %arg0, %c0_i32, %c0_i32_0 : i32, i32, i32
  }
  func.func @transform_7(%arg0: i32) -> (i32, i32, i32) {
    %c0_i32 = arith.constant 0 : i32
    %c0_i32_0 = arith.constant 0 : i32
    %c0_i32_1 = arith.constant 0 : i32
    return %arg0, %c0_i32, %c0_i32_0 : i32, i32, i32
  }
  func.func @transform_8(%arg0: i32) -> (i32, i32, i32) {
    %c0_i32 = arith.constant 0 : i32
    %c0_i32_0 = arith.constant 0 : i32
    %c0_i32_1 = arith.constant 0 : i32
    return %arg0, %c0_i32, %c0_i32_0 : i32, i32, i32
  }
}

</mosaic_0001>

<llo_original>
// kernel: tpu_custom_call.1
$region0: #{tpu_custom_call.1}
  #allocation0 [shape = 'u32[]', space=smem, size = 0x4, offset = 0x4, fixed_abs, tag = 'smem constant byte address 0x4 - core index']
  #allocation1 [shape = 'u32[144,128]{1,0:T(1,128)}', space=vmem, size = 0x12000, scoped, tag = 'internal scratch']
  %s0 = inlined_call_operand.vmem [shape: f32[2,128], index: 0, kind: input, shape index: {}]
  %s1 = inlined_call_operand.vmem [shape: f32[8,128], index: 1, kind: input, shape index: {}]
  %s2 = inlined_call_operand.vmem [shape: s32[2,4], index: 2, kind: input, shape index: {}]
  %s3 = inlined_call_operand.vmem [shape: s32[8,1], index: 3, kind: input, shape index: {}]
  %s4 = inlined_call_operand.vmem [shape: f32[2,2], index: 4, kind: input, shape index: {}]
  %s5 = inlined_call_operand.vmem [shape: s32[2,1], index: 5, kind: input, shape index: {}]
  %s6 = inlined_call_operand.hbm [shape: f32[1,2,4], index: 6, kind: output, shape index: {0}]
  %s7 = inlined_call_operand.hbm [shape: f32[1,2,4], index: 7, kind: output, shape index: {1}]
  %s8 = inlined_call_operand.hbm [shape: f32[1,1,2], index: 8, kind: output, shape index: {2}]
  %9 = xla_tuple %s6, %s7, %s8
  %s10 = sld [smem:[#allocation0]]
  $region50: #{tpu_custom_call.1} parent=0
    _
  %s12 = ssub.s32 1, %s10
  %s13 = scalar_select 0, %s12, %s10
  $region1: #{tpu_custom_call.1} parent=0
    #allocation2 [shape = 'u8[1024]{0}', space=vmem, size = 0x400, scoped, tag = 'output window, operand 0, single buffered']
    #allocation3 [shape = 's32[1]{0}', space=sflag, size = 0x4, scoped, tag = 'scoped memory for tpu_custom_call.1']
    #allocation4 [shape = 'u8[1024]{0}', space=vmem, size = 0x400, scoped, tag = 'output window, operand 1, single buffered']
    #allocation5 [shape = 's32[1]{0}', space=sflag, size = 0x4, scoped, tag = 'scoped memory for tpu_custom_call.1']
    #allocation6 [shape = 'u8[512]{0}', space=vmem, size = 0x400, scoped, tag = 'output window, operand 2, single buffered']
    %14 = vsyncpa [#allocation3], 0
    %15 = vsyncpa [#allocation5], 0
    // Predicated region
    $region2: #{tpu_custom_call.1} parent=1 // pred_check
      _
    $region3: #{tpu_custom_call.1} parent=1 // pred_check_branch
      %17 = sbr.rel (0) target = $region5
    $region4: #{tpu_custom_call.1} parent=1 // pred_region
      _
    $region5: #{tpu_custom_call.1} parent=1 // pred_fallthru
      _
    // Predicated region
    $region6: #{tpu_custom_call.1} parent=1 // pred_check
      _
    $region7: #{tpu_custom_call.1} parent=1 // pred_check_branch
      %19 = sbr.rel (0) target = $region9
    $region8: #{tpu_custom_call.1} parent=1 // pred_region
      _
    $region9: #{tpu_custom_call.1} parent=1 // pred_fallthru
      _
    // Predicated region
    $region10: #{tpu_custom_call.1} parent=1 // pred_check
      _
    $region11: #{tpu_custom_call.1} parent=1 // pred_check_branch
      %21 = sbr.rel (0) target = $region13
    $region12: #{tpu_custom_call.1} parent=1 // pred_region
      _
    $region13: #{tpu_custom_call.1} parent=1 // pred_fallthru
      _
    // Predicated region
    $region14: #{tpu_custom_call.1} parent=1 // pred_check
      _
    $region15: #{tpu_custom_call.1} parent=1 // pred_check_branch
      %23 = sbr.rel (0) target = $region17
    $region16: #{tpu_custom_call.1} parent=1 // pred_region
      _
    $region17: #{tpu_custom_call.1} parent=1 // pred_fallthru
      _
    // Predicated region
    $region18: #{tpu_custom_call.1} parent=1 // pred_check
      _
    $region19: #{tpu_custom_call.1} parent=1 // pred_check_branch
      %25 = sbr.rel (0) target = $region21
    $region20: #{tpu_custom_call.1} parent=1 // pred_region
      _
    $region21: #{tpu_custom_call.1} parent=1 // pred_fallthru
      _
    // Predicated region
    $region22: #{tpu_custom_call.1} parent=1 // pred_check
      _
    $region23: #{tpu_custom_call.1} parent=1 // pred_check_branch
      %27 = sbr.rel (0) target = $region25
    $region24: #{tpu_custom_call.1} parent=1 // pred_region
      _
    $region25: #{tpu_custom_call.1} parent=1 // pred_fallthru
      _
    %s28 = smul.u32 0, 2
    %v29 = vlaneseq
    %v30 = vshrl.u32 %v29, 7
    %v31 = vstv %s28
    %v32 = vadd.s32 %v31, %v30
    %vm33 = vcmp.lt.s32.totalorder %v32, 2
    %v34 = vld [vmem:[%s0] sm:$0x3]
    %vm35 = vcmask 1041408
    %v36 = vsel %vm35, %v34, -inf
    %37 = vmax.xlane.f32.xlu0 %v36
    %v38 = vpop.xlane.xlu0 %37
    %v39 = vsub.f32 %v34, %v38
    %v40 = vmul.f32 %v39, 1.442695
    %v41 = vpow.pop %v40
    %v42 = vsel %vm35, %v41, 0.0
    %43 = vadd.xlane.f32.xlu0 %v42
    %v44 = vpop.xlane.xlu0 %43
    %v45 = vlog2.pop %v44
    %v46 = vmul.f32 %v45, 0.6931472
    %v47 = vadd.f32 %v46, %v38
    %v48 = vld [vmem:[%s2] sm:$0x3]
    %v49 = vlaneseq
    %v50 = vand.u32 %v49, 127
    %51 = vset.pattern.permute.xlu0 0
    %52 = vperm.xlu0 %51, %v48
    %v53 = vpop.permute.xlu0 %52
    %vm54 = vcmp.eq.s32.totalorder %v50, %v53
    %v55 = vsel %vm54, %v34, 0.0
    %v56 = vsel %vm35, %v55, 0.0
    %57 = vadd.xlane.f32.xlu0 %v56
    %v58 = vpop.xlane.xlu0 %57
    %vm59 = vcmp.eq.s32.totalorder %v50, 0
    %v60 = vsel %vm59, 1, 0
    %v61 = vcvt.s32.f32 %v60
    %v62 = vmul.f32 %v58, %v61
    %v63 = vadd.f32 %v62, 0.0
    %64 = vset.pattern.permute.xlu0 1
    %65 = vperm.xlu0 %64, %v48
    %v66 = vpop.permute.xlu0 %65
    %vm67 = vcmp.eq.s32.totalorder %v50, %v66
    %v68 = vsel %vm67, %v34, 0.0
    %v69 = vsel %vm35, %v68, 0.0
    %70 = vadd.xlane.f32.xlu0 %v69
    %v71 = vpop.xlane.xlu0 %70
    %vm72 = vcmp.eq.s32.totalorder %v50, 1
    %v73 = vsel %vm72, 1, 0
    %v74 = vcvt.s32.f32 %v73
    %v75 = vmul.f32 %v71, %v74
    %v76 = vadd.f32 %v63, %v75
    %77 = vset.pattern.permute.xlu0 2
    %78 = vperm.xlu0 %77, %v48
    %v79 = vpop.permute.xlu0 %78
    %vm80 = vcmp.eq.s32.totalorder %v50, %v79
    %v81 = vsel %vm80, %v34, 0.0
    %v82 = vsel %vm35, %v81, 0.0
    %83 = vadd.xlane.f32.xlu0 %v82
    %v84 = vpop.xlane.xlu0 %83
    %vm85 = vcmp.eq.s32.totalorder %v50, 2
    %v86 = vsel %vm85, 1, 0
    %v87 = vcvt.s32.f32 %v86
    %v88 = vmul.f32 %v84, %v87
    %v89 = vadd.f32 %v76, %v88
    %90 = vset.pattern.permute.xlu0 3
    %91 = vperm.xlu0 %90, %v48
    %v92 = vpop.permute.xlu0 %91
    %vm93 = vcmp.eq.s32.totalorder %v50, %v92
    %v94 = vsel %vm93, %v34, 0.0
    %v95 = vsel %vm35, %v94, 0.0
    %96 = vadd.xlane.f32.xlu0 %v95
    %v97 = vpop.xlane.xlu0 %96
    %vm98 = vcmp.eq.s32.totalorder %v50, 3
    %v99 = vsel %vm98, 1, 0
    %v100 = vcvt.s32.f32 %v99
    %v101 = vmul.f32 %v97, %v100
    %v102 = vadd.f32 %v89, %v101
    %vm103 = vcmp.ge.s32.totalorder %v48, 0
    %v104 = vsel %vm33, 1, 0
    %vm105 = vcmp.eq.s32.totalorder %v104, 1
    %vm106 = vmand %vm105, %vm103
    %v107 = vsub.f32 %v47, %v102
    %v108 = vsel %vm106, %v107, 0.0
    %vm109 = vcmask 25600
    %v110 = vsel %vm109, %v108, 0.0
    %v111 = vrot.slane %v110, 4
    %v112 = vadd.f32 %v110, %v111
    %v113 = vrot.slane %v112, 2
    %v114 = vadd.f32 %v112, %v113
    %v115 = vrot.slane %v114, 1
    %v116 = vadd.f32 %v114, %v115
    %vm117 = vcmask 24576
    %118 = vst.msk [vmem:[#allocation2] sm:$0x1] %vm117, %v116
    %v119 = vsel %vm106, 1, 0
    %v120 = vcvt.s32.f32 %v119
    %v121 = vsel %vm109, %v120, 0.0
    %v122 = vrot.slane %v121, 4
    %v123 = vadd.f32 %v121, %v122
    %v124 = vrot.slane %v123, 2
    %v125 = vadd.f32 %v123, %v124
    %v126 = vrot.slane %v125, 1
    %v127 = vadd.f32 %v125, %v126
    %128 = vst.msk [vmem:[#allocation2 + $0x1] sm:$0x1] %vm117, %v127
    %v129 = vld [vmem:[%s1] sm:$0xff]
    %130 = vmax.xlane.f32.xlu0 %v129
    %v131 = vpop.xlane.xlu0 %130
    %v132 = vsub.f32 %v129, %v131
    %v133 = vmul.f32 %v132, 1.442695
    %v134 = vpow.pop %v133
    %135 = vadd.xlane.f32.xlu0 %v134
    %v136 = vpop.xlane.xlu0 %135
    %v137 = vlog2.pop %v136
    %v138 = vmul.f32 %v137, 0.6931472
    %v139 = vadd.f32 %v138, %v131
    %v140 = vld [vmem:[%s3] sm:$0xff]
    %141 = vset.pattern.permute.xlu0 0
    %142 = vperm.xlu0 %141, %v140
    %v143 = vpop.permute.xlu0 %142
    %vm144 = vcmp.eq.s32.totalorder %v50, %v143
    %v145 = vsel %vm144, %v129, 0.0
    %146 = vadd.xlane.f32.xlu0 %v145
    %v147 = vpop.xlane.xlu0 %146
    %s148 = smul.u32 0, 8
    %v149 = vstv %s148
    %v150 = vadd.s32 %v149, %v30
    %vm151 = vcmp.lt.s32.totalorder %v150, 8
    %vm152 = vcmp.ge.s32.totalorder %v140, 0
    %vm153 = vmand %vm151, %vm152
    %v154 = vsub.f32 %v139, %v147
    %v155 = vsel %vm153, %v154, 0.0
    %vm156 = vcmp.lt.s32.totalorder %v30, 0
    %v157 = vsub.s32 0, %v30
    %v158 = vsel %vm156, %v157, %v30
    %v159 = vshrl.u32 %v158, 2
    %v160 = vand.u32 %v158, 3
    %v161 = vsub.s32 0, %v160
    %v162 = vsel %vm156, %v161, %v160
    %vm163 = vcmp.ne.s32.totalorder %v162, 0
    %vm164 = vcmp.lt.s32.totalorder %v162, 0
    %vm165 = vmand %vm164, %vm163
    %v166 = vadd.s32 %v162, 4
    %v167 = vsel %vm165, %v166, %v162
    %vm168 = vcmp.eq.s32.totalorder %v167, %v50
    %v169 = vsel %vm168, 1, 0
    %v170 = vcvt.s32.f32 %v169
    %172 = vset.pattern.permute.xlu0 0
    %173 = vperm.xlu0 %172, %v155
    %v174 = vpop.permute.xlu0 %173
    %v176 = vmul.f32 %v174, %v170
    %vm177 = vcmask 31744
    %v178 = vsel %vm177, %v176, 0.0
    %v179 = vrot.slane %v178, 4
    %v180 = vadd.f32 %v178, %v179
    %v181 = vrot.slane %v180, 2
    %v182 = vadd.f32 %v180, %v181
    %v183 = vrot.slane %v182, 1
    %v184 = vadd.f32 %v182, %v183
    %185 = vst.msk [vmem:[#allocation4] sm:$0x1] %vm117, %v184
    %v186 = vsel %vm153, 1, 0
    %v187 = vcvt.s32.f32 %v186
    %189 = vset.pattern.permute.xlu0 0
    %190 = vperm.xlu0 %189, %v187
    %v191 = vpop.permute.xlu0 %190
    %v193 = vmul.f32 %v191, %v170
    %v194 = vsel %vm177, %v193, 0.0
    %v195 = vrot.slane %v194, 4
    %v196 = vadd.f32 %v194, %v195
    %v197 = vrot.slane %v196, 2
    %v198 = vadd.f32 %v196, %v197
    %v199 = vrot.slane %v198, 1
    %v200 = vadd.f32 %v198, %v199
    %201 = vst.msk [vmem:[#allocation4 + $0x1] sm:$0x1] %vm117, %v200
    %v202 = vld [vmem:[%s4] sm:$0x3]
    %vm203 = vcmask 9216
    %v204 = vsel %vm203, %v202, -inf
    %205 = vmax.xlane.f32.xlu0 %v204
    %v206 = vpop.xlane.xlu0 %205
    %v207 = vsub.f32 %v202, %v206
    %v208 = vmul.f32 %v207, 1.442695
    %v209 = vpow.pop %v208
    %v210 = vsel %vm203, %v209, 0.0
    %211 = vadd.xlane.f32.xlu0 %v210
    %v212 = vpop.xlane.xlu0 %211
    %v213 = vlog2.pop %v212
    %v214 = vmul.f32 %v213, 0.6931472
    %v215 = vadd.f32 %v214, %v206
    %v216 = vld [vmem:[%s5] sm:$0x3]
    %217 = vset.pattern.permute.xlu0 0
    %218 = vperm.xlu0 %217, %v216
    %v219 = vpop.permute.xlu0 %218
    %vm220 = vcmp.eq.s32.totalorder %v50, %v219
    %v221 = vsel %vm220, %v202, 0.0
    %v222 = vsel %vm203, %v221, 0.0
    %223 = vadd.xlane.f32.xlu0 %v222
    %v224 = vpop.xlane.xlu0 %223
    %vm225 = vcmp.ge.s32.totalorder %v216, 0
    %vm226 = vmand %vm33, %vm225
    %v227 = vsub.f32 %v215, %v224
    %v228 = vsel %vm226, %v227, 0.0
    %vm229 = vcmask 1024
    %v230 = vsel %vm229, %v228, 0.0
    %v231 = vrot.slane %v230, 4
    %v232 = vadd.f32 %v230, %v231
    %v233 = vrot.slane %v232, 2
    %v234 = vadd.f32 %v232, %v233
    %v235 = vrot.slane %v234, 1
    %v236 = vadd.f32 %v234, %v235
    %vm237 = vcmask 0
    %238 = vst.msk [vmem:[#allocation6] sm:$0x1] %vm237, %v236
    %v239 = vsel %vm226, 1, 0
    %v240 = vcvt.s32.f32 %v239
    %v241 = vsel %vm229, %v240, 0.0
    %v242 = vrot.slane %v241, 4
    %v243 = vadd.f32 %v241, %v242
    %v244 = vrot.slane %v243, 2
    %v245 = vadd.f32 %v243, %v244
    %v246 = vrot.slane %v245, 1
    %v247 = vadd.f32 %v245, %v246
    %249 = vrot.lane.b32.xlu0 %v247, 1
    %v250 = vpop.permute.xlu0 %249
    %vm252 = vcmask 8200
    %253 = vst.msk [vmem:[#allocation6] sm:$0x1] %vm252, %v250
    // Predicated region
    $region26: #{tpu_custom_call.1} parent=1 // pred_check
      _
    $region27: #{tpu_custom_call.1} parent=1 // pred_check_branch
      %255 = sbr.rel (0) target = $region29
    $region28: #{tpu_custom_call.1} parent=1 // pred_region
      %s257 = ssub.s32 32, 32
      %258 = vsyncadd [#allocation3], %s257
      %s260 = sshll.u32 [#allocation2], 4
      %s261 = int_to_ptr.vmem [resolvable:$true] %s260
      %263 = dma.vmem_to_hbm [thread:$0]  %s261, 32, %s6, [#allocation3]
    $region29: #{tpu_custom_call.1} parent=1 // pred_fallthru
      _
    // Predicated region
    $region30: #{tpu_custom_call.1} parent=1 // pred_check
      _
    $region31: #{tpu_custom_call.1} parent=1 // pred_check_branch
      %265 = sbr.rel (0) target = $region33
    $region32: #{tpu_custom_call.1} parent=1 // pred_region
      %s267 = ssub.s32 32, 32
      %268 = vsyncadd [#allocation5], %s267
      %s270 = sshll.u32 [#allocation4], 4
      %s271 = int_to_ptr.vmem [resolvable:$true] %s270
      %273 = dma.vmem_to_hbm [thread:$0]  %s271, 32, %s7, [#allocation5]
    $region33: #{tpu_custom_call.1} parent=1 // pred_fallthru
      _
    // Predicated region
    $region34: #{tpu_custom_call.1} parent=1 // pred_check
      _
    $region35: #{tpu_custom_call.1} parent=1 // pred_check_branch
      %275 = sbr.rel (0) target = $region37
    $region36: #{tpu_custom_call.1} parent=1 // pred_region
      %s277 = ssub.s32 16, 16
      %278 = vsyncadd [#allocation5], %s277
      %s280 = sshll.u32 [#allocation6], 4
      %s281 = int_to_ptr.vmem [resolvable:$true] %s280
      %283 = dma.vmem_to_hbm [thread:$0]  %s281, 16, %s8, [#allocation5]
    $region37: #{tpu_custom_call.1} parent=1 // pred_fallthru
      _
    // Predicated region
    $region38: #{tpu_custom_call.1} parent=1 // pred_check
      _
    $region39: #{tpu_custom_call.1} parent=1 // pred_check_branch
      %285 = sbr.rel (0) target = $region41
    $region40: #{tpu_custom_call.1} parent=1 // pred_region
      %286 = dma.done [#allocation3], 32
    $region41: #{tpu_custom_call.1} parent=1 // pred_fallthru
      _
    // Predicated region
    $region42: #{tpu_custom_call.1} parent=1 // pred_check
      _
    $region43: #{tpu_custom_call.1} parent=1 // pred_check_branch
      %288 = sbr.rel (0) target = $region45
    $region44: #{tpu_custom_call.1} parent=1 // pred_region
      %289 = dma.done [#allocation5], 32
    $region45: #{tpu_custom_call.1} parent=1 // pred_fallthru
      _
    // Predicated region
    $region46: #{tpu_custom_call.1} parent=1 // pred_check
      _
    $region47: #{tpu_custom_call.1} parent=1 // pred_check_branch
      %291 = sbr.rel (0) target = $region49
    $region48: #{tpu_custom_call.1} parent=1 // pred_region
      %292 = dma.done [#allocation5], 16
    $region49: #{tpu_custom_call.1} parent=1 // pred_fallthru
      _
    %293 = vsyncpa [#allocation3], 1
    %294 = vsyncpa [#allocation5], 1

</llo_original>
